<compile_context>
chip_gen: v5e
topology: v5e:2x2
jax: 0.10.0
libtpu: 0.0.40
codegen_flags: <defaults>
</compile_context>

<pallas_src>
import functools

import jax
import jax.numpy as jnp
from jax.experimental import pallas as pl
from jax.experimental.pallas import tpu as pltpu

_LANE = 128
# Sentinel for padded rows: so negative that even after adding per-table vocab offsets it
# can never match a valid (non-negative) table row index -> one-hot row is all zeros.
_PAD_SENTINEL = -(2 ** 30)


def _round_up(v, m):
    return (v + m - 1) // m * m


def _feature_pad(emb_dim):
    # Lane-dense padding only pays for emb_dim >= 128; below that, writing the true width
    # (masked vst) beats 4x-inflated HBM writeback plus a trailing feature-dim slice copy.
    if emb_dim >= _LANE:
        return _round_up(emb_dim, _LANE)
    return emb_dim


def _choose_tm(n):
    # >= 4 grid steps so the "parallel" axis feeds both v7x TensorCores and the pipeline
    # has overlap; cap the row tile at 512 to amortize the ~0.35us per-step overhead.
    tm = _round_up(max((n + 3) // 4, 1), 8)
    return int(min(max(tm, 8), 512))


# --------------------------------------------------------------------------------------
# Kernel
# --------------------------------------------------------------------------------------
def _ast_node_encoder_kernel(ids_ref, tab_ref, out_ref, *,
                             max_depth, attr_offset, depth_offset):
    """One row-tile of the output per grid step.

    ids_ref : (TM, 3) int32     -- [:,0]=type id, [:,1]=attribute id, [:,2]=depth
    tab_ref : (V_pad, E_out)    -- concat(type_tab, attr_tab, depth_tab), zero padded
    out_ref : (TM, E_out) f32
    """
    tm = out_ref.shape[0]
    v_pad = tab_ref.shape[0]

    ids = ids_ref[...]
    t = ids[:, 0:1]                                           # type ids (offset 0)
    a = ids[:, 1:2] + attr_offset                             # attribute ids
    # PyTorch: depth[depth > max_depth] = max_depth  (upper clamp only).
    d = jnp.minimum(ids[:, 2:3], max_depth) + depth_offset    # depth ids

    # Fused one-hot over the concatenated vocab. Ranges are disjoint -> at most one match
    # per (row, col), so OR the boolean masks and convert ONCE (6 elementwise passes
    # instead of 9 over the (tm, v_pad) tile).
    col = jax.lax.broadcasted_iota(jnp.int32, (tm, v_pad), 1)
    onehot = ((t == col) | (a == col) | (d == col)).astype(tab_ref.dtype)

    # Single MXU pass does the gather + 3-way sum (K accumulation).
    out_ref[...] = jnp.dot(onehot, tab_ref[...],
                           preferred_element_type=jnp.float32).astype(out_ref.dtype)


# --------------------------------------------------------------------------------------
# Parameter-init-time work (hoisted out of the forward pass)
# --------------------------------------------------------------------------------------
def build_fused_table(type_tab, attr_tab, depth_tab, *, dtype=jnp.float32):
    """Concatenate the three embedding tables along the vocab axis and zero-pad.

    Run ONCE when the module parameters are created / loaded (not per forward call).
    On v6e/v7x, pass dtype=jnp.bfloat16 if the model tolerates bf16-rounded embeddings:
    it halves resident-table VMEM and runs the MXU at native bf16 rate.
    """
    emb_dim = type_tab.shape[1]
    nt, na, nd = type_tab.shape[0], attr_tab.shape[0], depth_tab.shape[0]
    v_total = nt + na + nd
    v_pad = _round_up(v_total, _LANE)     # MXU-native K; sentinel rows stay zero
    e_out = _feature_pad(emb_dim)

    tab = jnp.zeros((v_pad, e_out), dtype=dtype)
    tab = tab.at[:nt, :emb_dim].set(type_tab.astype(dtype))
    tab = tab.at[nt:nt + na, :emb_dim].set(attr_tab.astype(dtype))
    tab = tab.at[nt + na:v_total, :emb_dim].set(depth_tab.astype(dtype))
    return tab


# --------------------------------------------------------------------------------------
# Forward pass
# --------------------------------------------------------------------------------------
def ast_node_encoder_forward(fused_tab, x, depth, *, emb_dim, num_nodetypes,
                             num_nodeattributes, max_depth, tm=None):
    """Pallas implementation of ASTNodeEncoder.forward.

    fused_tab : (V_pad, E_out) output of build_fused_table()
    x         : (N, 2) int  -- col 0 = node type id, col 1 = node attribute id
    depth     : (N,)   int
    returns   : (N, emb_dim) float32
    """
    n = x.shape[0]
    v_pad, e_out = fused_tab.shape

    tm = _choose_tm(n) if tm is None else tm
    n_pad = _round_up(max(n, 1), tm)

    # Fused index stream: one (N_pad, 3) int32 array -> one DMA per grid step. Padded
    # rows get an out-of-range sentinel so they produce zero rows (never alias a table row).
    ids = jnp.concatenate(
        [x.astype(jnp.int32), depth.reshape(-1, 1).astype(jnp.int32)], axis=1)
    if n_pad != n:
        ids = jnp.concatenate(
            [ids, jnp.full((n_pad - n, 3), _PAD_SENTINEL, dtype=jnp.int32)], axis=0)

    kernel = functools.partial(
        _ast_node_encoder_kernel,
        max_depth=int(max_depth),
        attr_offset=int(num_nodetypes),
        depth_offset=int(num_nodetypes + num_nodeattributes),
    )

    grid = (n_pad // tm,)
    itemsize = jnp.dtype(fused_tab.dtype).itemsize
    cost = pl.CostEstimate(
        flops=2 * n_pad * v_pad * e_out,
        transcendentals=0,
        # Table counted once: it is resident (constant index_map + Buffered(1)).
        bytes_accessed=ids.size * 4 + fused_tab.size * itemsize + n_pad * e_out * 4,
    )

    out_padded = pl.pallas_call(
        kernel,
        out_shape=jax.ShapeDtypeStruct((n_pad, e_out), jnp.float32),
        grid_spec=pltpu.PrefetchScalarGridSpec(
            num_scalar_prefetch=0,
            grid=grid,
            in_specs=[
                # Fused ids: one small DMA per step.
                pl.BlockSpec((tm, 3), lambda i: (i, 0)),
                # Resident fused table: constant block index -> single-buffer it.
                pl.BlockSpec((v_pad, e_out), lambda i: (0, 0),
                             pipeline_mode=pl.Buffered(1)),
            ],
            out_specs=pl.BlockSpec((tm, e_out), lambda i: (i, 0)),
        ),
        compiler_params=pltpu.CompilerParams(
            dimension_semantics=("parallel",),
            vmem_limit_bytes=32 * 1024 * 1024,   # <= v7x scoped ceiling; fine on v5e/v6e
        ),
        cost_estimate=cost,
    )(ids, fused_tab)

    # Strip row padding (and feature padding only if emb_dim was lane-padded).
    if e_out == emb_dim:
        return out_padded[:n]
    return out_padded[:n, :emb_dim]


def ast_node_encoder(x, depth, type_tab, attr_tab, depth_tab, max_depth, *, tm=None):
    """Convenience one-shot wrapper (builds the fused table per call; prefer the
    build_fused_table + ast_node_encoder_forward split for repeated forward passes)."""
    fused_tab = build_fused_table(type_tab, attr_tab, depth_tab)
    return ast_node_encoder_forward(
        fused_tab, x, depth,
        emb_dim=type_tab.shape[1],
        num_nodetypes=type_tab.shape[0],
        num_nodeattributes=attr_tab.shape[0],
        max_depth=max_depth, tm=tm)


def _reference(x, depth, type_tab, attr_tab, depth_tab, max_depth):
    d = jnp.minimum(depth, max_depth)
    return (jnp.take(type_tab, x[:, 0], axis=0)
            + jnp.take(attr_tab, x[:, 1], axis=0)
            + jnp.take(depth_tab, d, axis=0))


if __name__ == "__main__":
    # Small, deterministic configuration consistent with the module's __init__.
    emb_dim = 32
    num_nodetypes = 8
    num_nodeattributes = 16
    max_depth = 10
    n = 1000  # number of AST nodes (deliberately NOT a multiple of the row tile)

    key = jax.random.PRNGKey(0)
    k_type, k_attr, k_depth_tab, k_x0, k_x1, k_d = jax.random.split(key, 6)

    # Deterministic "embedding weights" (synthetic init, like nn.Embedding's normal init).
    type_tab = jax.random.normal(k_type, (num_nodetypes, emb_dim), dtype=jnp.float32)
    attr_tab = jax.random.normal(k_attr, (num_nodeattributes, emb_dim), dtype=jnp.float32)
    depth_tab = jax.random.normal(k_depth_tab, (max_depth + 1, emb_dim), dtype=jnp.float32)

    # Inputs: x[:, 0]=type id, x[:, 1]=attribute id; depth (some above max_depth -> clamp).
    x0 = jax.random.randint(k_x0, (n, 1), 0, num_nodetypes, dtype=jnp.int32)
    x1 = jax.random.randint(k_x1, (n, 1), 0, num_nodeattributes, dtype=jnp.int32)
    x = jnp.concatenate([x0, x1], axis=1)
    depth = jax.random.randint(k_d, (n,), 0, max_depth + 5, dtype=jnp.int32)

    # --- parameter-init-time work (done once, outside the forward path) -------------
    fused_tab = jax.block_until_ready(build_fused_table(type_tab, attr_tab, depth_tab))

    forward = functools.partial(
        ast_node_encoder_forward,
        emb_dim=emb_dim,
        num_nodetypes=num_nodetypes,
        num_nodeattributes=num_nodeattributes,
        max_depth=max_depth)

    # --- forward pass ---------------------------------------------------------------
    out = forward(fused_tab, x, depth)
    out = jax.block_until_ready(out)

    ref = _reference(x, depth, type_tab, attr_tab, depth_tab, max_depth)
    assert out.shape == (n, emb_dim)
    assert jnp.allclose(out, ref, atol=1e-5, rtol=1e-5), "mismatch vs. reference"

    print("KERNEL_OK")
</pallas_src>

<mosaic_0001>
module attributes {stable_mosaic.version = 11 : i64} {
  func.func @_ast_node_encoder_kernel(%arg0: i32, %arg1: memref<256x3xi32, #tpu.memory_space<vmem>>, %arg2: memref<128x32xf32, #tpu.memory_space<vmem>>, %arg3: memref<256x32xf32, #tpu.memory_space<vmem>>) attributes {dimension_semantics = [#tpu.dimension_semantics<parallel>], iteration_bounds = array<i64: 4>, scalar_prefetch = 0 : i64, scratch_operands = 0 : i64, tpu.core_type = #tpu.core_type<tc>, window_params = [{transform_indices = @transform_0, window_bounds = array<i64: 256, 3>}, {pipeline_mode = #tpu.pipeline_mode<synchronous>, transform_indices = @transform_1, window_bounds = array<i64: 128, 32>}, {transform_indices = @transform_2, window_bounds = array<i64: 256, 32>}]} {
    %c0 = arith.constant 0 : index
    %c0_0 = arith.constant 0 : index
    %0 = vector.load %arg1[%c0, %c0_0] : memref<256x3xi32, #tpu.memory_space<vmem>>, vector<256x3xi32>
    %1 = vector.extract_strided_slice %0 {offsets = [0, 0], sizes = [256, 1], strides = [1, 1]} : vector<256x3xi32> to vector<256x1xi32>
    %2 = vector.extract_strided_slice %0 {offsets = [0, 1], sizes = [256, 1], strides = [1, 1]} : vector<256x3xi32> to vector<256x1xi32>
    %c8_i32 = arith.constant 8 : i32
    %3 = vector.broadcast %c8_i32 : i32 to vector<256x1xi32>
    %4 = arith.addi %2, %3 : vector<256x1xi32>
    %5 = vector.extract_strided_slice %0 {offsets = [0, 2], sizes = [256, 1], strides = [1, 1]} : vector<256x3xi32> to vector<256x1xi32>
    %c10_i32 = arith.constant 10 : i32
    %6 = vector.broadcast %c10_i32 : i32 to vector<256x1xi32>
    %7 = arith.minsi %5, %6 : vector<256x1xi32>
    %c24_i32 = arith.constant 24 : i32
    %8 = vector.broadcast %c24_i32 : i32 to vector<256x1xi32>
    %9 = arith.addi %7, %8 : vector<256x1xi32>
    %10 = tpu.iota {dimensions = array<i32: 1>} : vector<256x128xi32>
    %11 = vector.broadcast %1 : vector<256x1xi32> to vector<256x128xi32>
    %12 = arith.cmpi eq, %11, %10 : vector<256x128xi32>
    %13 = vector.broadcast %4 : vector<256x1xi32> to vector<256x128xi32>
    %14 = arith.cmpi eq, %13, %10 : vector<256x128xi32>
    %15 = arith.ori %12, %14 : vector<256x128xi1>
    %16 = vector.broadcast %9 : vector<256x1xi32> to vector<256x128xi32>
    %17 = arith.cmpi eq, %16, %10 : vector<256x128xi32>
    %18 = arith.ori %15, %17 : vector<256x128xi1>
    %19 = arith.extui %18 : vector<256x128xi1> to vector<256x128xi32>
    %20 = arith.sitofp %19 : vector<256x128xi32> to vector<256x128xf32>
    %c0_1 = arith.constant 0 : index
    %c0_2 = arith.constant 0 : index
    %21 = vector.load %arg2[%c0_1, %c0_2] : memref<128x32xf32, #tpu.memory_space<vmem>>, vector<128x32xf32>
    %cst = arith.constant dense<0.000000e+00> : vector<256x32xf32>
    %22 = tpu.matmul %20, %21, %cst {dimension_numbers = #tpu.dot_dimension_numbers<[1], [0], [0], [1], [0, 0, 1, 1], [], []>} : vector<256x128xf32>, vector<128x32xf32>, vector<256x32xf32> -> vector<256x32xf32>
    %c0_3 = arith.constant 0 : index
    %c0_4 = arith.constant 0 : index
    %23 = vector.load %arg3[%c0_3, %c0_4] : memref<256x32xf32, #tpu.memory_space<vmem>>, vector<256x32xf32>
    tpu.vector_store %arg3[%c0_3, %c0_4], %22 {strides = array<i32>} : memref<256x32xf32, #tpu.memory_space<vmem>>, vector<256x32xf32>,
    return
  }
  func.func @transform_0(%arg0: i32) -> (i32, i32) {
    %c0_i32 = arith.constant 0 : i32
    %c0_i32_0 = arith.constant 0 : i32
    return %arg0, %c0_i32 : i32, i32
  }
  func.func @transform_1(%arg0: i32) -> (i32, i32) {
    %c0_i32 = arith.constant 0 : i32
    %c0_i32_0 = arith.constant 0 : i32
    %c0_i32_1 = arith.constant 0 : i32
    return %c0_i32, %c0_i32_0 : i32, i32
  }
  func.func @transform_2(%arg0: i32) -> (i32, i32) {
    %c0_i32 = arith.constant 0 : i32
    %c0_i32_0 = arith.constant 0 : i32
    return %arg0, %c0_i32 : i32, i32
  }
}

</mosaic_0001>

<llo_original>
// kernel: tpu_custom_call.1
$region0: #{tpu_custom_call.1}
  #allocation0 [shape = 'u32[]', space=smem, size = 0x4, offset = 0x4, fixed_abs, tag = 'smem constant byte address 0x4 - core index']
  #allocation1 [shape = 'u32[72,128]{1,0:T(1,128)}', space=vmem, size = 0x9000, scoped, tag = 'internal scratch']
  %s0 = inlined_call_operand.vmem [shape: s32[1024,3], index: 0, kind: input, shape index: {}]
  %s1 = inlined_call_operand.vmem [shape: f32[128,32], index: 1, kind: input, shape index: {}]
  %s2 = inlined_call_operand.vmem [shape: f32[1024,32], index: 2, kind: output, shape index: {}]
  %s3 = sld [smem:[#allocation0]]
  $region41: #{tpu_custom_call.1} parent=0
    _
  %s5 = ssub.s32 1, %s3
  %s6 = scalar_select 0, %s5, %s3
  loop: start=0, step=1, limit=6
  $region2: #{tpu_custom_call.1} parent=0 // loop_pre_header
    _
  $region3: #{tpu_custom_call.1} parent=0 // loop_header
    %s8 = sphi 0, %s12
    %p9 = scmp.ge.s32.totalorder %s8, 6
    %s18 = sphi 0, %s20
    %s21 = sphi 0, %s18
    %s22 = sphi 0, %s21
    %s38 = sphi 0, %s22
    %s42 = sphi 0, %s42
    %s44 = sphi 0, %s42
    %s45 = sphi 0, %s44
    %s59 = sphi 0, %s45
    %s65 = sphi 0, %s67
    %s68 = sphi 0, %s65
    %s69 = sphi 0, %s68
    %s85 = sphi 0, %s69
  $region4: #{tpu_custom_call.1} parent=0 // loop_header_branch
    %11 = sbr.rel (%p9) target = $region8
  $region5: #{tpu_custom_call.1} parent=0 // loop_body
    %s13 = ssub.s32 %s8, 1
    %s14 = ssub.s32 %s8, 2
    %s15 = sadd.s32 %s8, 1
    %s16 = ssub.s32 %s8, %s15
    %p17 = scmp.eq.s32.totalorder %s16, 0
    %s19 = sadd.s32 %s18, 1
    %s20 = scalar_select %p17, %s18, %s19
    %p23 = pneg %p17
    %p24 = scmp.eq.s32.totalorder %s8, 3
    %p25 = por %p23, %p24
    %p26 = scmp.ne.s32.totalorder %s18, %s21
    %p27 = scmp.eq.s32.totalorder %s8, 0
    %p28 = por %p26, %p27
    %p29 = scmp.ne.s32.totalorder %s18, %s21
    %p30 = scmp.eq.s32.totalorder %s13, 3
    %p31 = por %p29, %p30
    %p32 = scmp.ne.s32.totalorder %s21, %s22
    %p33 = scmp.eq.s32.totalorder %s13, 0
    %p34 = por %p32, %p33
    %p35 = scmp.ne.s32.totalorder %s21, %s22
    %p36 = scmp.eq.s32.totalorder %s14, 3
    %p37 = por %p35, %p36
    %p39 = scmp.ne.s32.totalorder %s22, %s38
    %p40 = scmp.eq.s32.totalorder %s14, 0
    %p41 = por %p39, %p40
    %s43 = sadd.s32 %s42, 1
    %p46 = scmp.eq.s32.totalorder %s8, 3
    %p47 = scmp.ne.s32.totalorder %s42, %s44
    %p48 = scmp.eq.s32.totalorder %s8, 0
    %p49 = por %p47, %p48
    %p50 = scmp.ne.s32.totalorder %s42, %s44
    %p51 = scmp.eq.s32.totalorder %s13, 3
    %p52 = por %p50, %p51
    %p53 = scmp.ne.s32.totalorder %s44, %s45
    %p54 = scmp.eq.s32.totalorder %s13, 0
    %p55 = por %p53, %p54
    %p56 = scmp.ne.s32.totalorder %s44, %s45
    %p57 = scmp.eq.s32.totalorder %s14, 3
    %p58 = por %p56, %p57
    %p60 = scmp.ne.s32.totalorder %s45, %s59
    %p61 = scmp.eq.s32.totalorder %s14, 0
    %p62 = por %p60, %p61
    %s63 = ssub.s32 %s8, %s15
    %p64 = scmp.eq.s32.totalorder %s63, 0
    %s66 = sadd.s32 %s65, 1
    %s67 = scalar_select %p64, %s65, %s66
    %p70 = pneg %p64
    %p71 = scmp.eq.s32.totalorder %s8, 3
    %p72 = por %p70, %p71
    %p73 = scmp.ne.s32.totalorder %s65, %s68
    %p74 = scmp.eq.s32.totalorder %s8, 0
    %p75 = por %p73, %p74
    %p76 = scmp.ne.s32.totalorder %s65, %s68
    %p77 = scmp.eq.s32.totalorder %s13, 3
    %p78 = por %p76, %p77
    %p79 = scmp.ne.s32.totalorder %s68, %s69
    %p80 = scmp.eq.s32.totalorder %s13, 0
    %p81 = por %p79, %p80
    %p82 = scmp.ne.s32.totalorder %s68, %s69
    %p83 = scmp.eq.s32.totalorder %s14, 3
    %p84 = por %p82, %p83
    %p86 = scmp.ne.s32.totalorder %s69, %s85
    %p87 = scmp.eq.s32.totalorder %s14, 0
    %p88 = por %p86, %p87
    %p89 = scmp.le.s32.totalorder 1, %s8
    %p90 = scmp.lt.s32.totalorder %s8, 5
    %p91 = pnand %p89, %p90
    %p92 = pneg %p91
    // Predicated region
    $region9: #{tpu_custom_call.1} parent=5 // pred_check
      _
    $region10: #{tpu_custom_call.1} parent=5 // pred_check_branch
      %94 = sbr.rel (%p91) target = $region12
    $region11: #{tpu_custom_call.1} parent=5 // pred_region
      %s95 = ssub.s32 %s8, 1
      // Predicated region
      $region13: #{tpu_custom_call.1} parent=11 // pred_check
        %p96 = pneg %p55
      $region14: #{tpu_custom_call.1} parent=11 // pred_check_branch
        %98 = sbr.rel (%p96) target = $region16
      $region15: #{tpu_custom_call.1} parent=11 // pred_region
        _
      $region16: #{tpu_custom_call.1} parent=11 // pred_fallthru
        _
    $region12: #{tpu_custom_call.1} parent=5 // pred_fallthru
      _
    %p99 = scmp.lt.s32.totalorder %s8, 4
    // Predicated region
    $region17: #{tpu_custom_call.1} parent=5 // pred_check
      %p100 = pneg %p99
    $region18: #{tpu_custom_call.1} parent=5 // pred_check_branch
      %102 = sbr.rel (%p100) target = $region20
    $region19: #{tpu_custom_call.1} parent=5 // pred_region
      // Predicated region
      $region21: #{tpu_custom_call.1} parent=19 // pred_check
        %p103 = pneg %p28
      $region22: #{tpu_custom_call.1} parent=19 // pred_check_branch
        %105 = sbr.rel (%p103) target = $region24
      $region23: #{tpu_custom_call.1} parent=19 // pred_region
        %s106 = smul.u32 32, %s8
        %p107 = scmp.lt.s32.totalorder %s106, 127
        %s108 = scalar_select %p107, %s106, 127
        %s109 = smul.addr %s108, 8
        %s110 = scalar_lea.vmem %s0, %s109
        %s111 = smul.u32 32, %s8
      $region24: #{tpu_custom_call.1} parent=19 // pred_fallthru
        _
    $region20: #{tpu_custom_call.1} parent=5 // pred_fallthru
      _
    %p112 = scmp.le.s32.totalorder 1, %s8
    %p113 = scmp.lt.s32.totalorder %s8, 5
    %p114 = pnand %p112, %p113
    %p115 = pneg %p114
    // Predicated region
    $region25: #{tpu_custom_call.1} parent=5 // pred_check
      _
    $region26: #{tpu_custom_call.1} parent=5 // pred_check_branch
      %117 = sbr.rel (%p114) target = $region28
    $region27: #{tpu_custom_call.1} parent=5 // pred_region
      %s118 = ssub.s32 %s8, 1
      %s119 = smul.u32 32, %s13
      %p120 = scmp.lt.s32.totalorder %s119, 127
      %s121 = scalar_select %p120, %s119, 127
      %s122 = smul.addr %s121, 8
      %s123 = scalar_lea.vmem %s0, %s122
      %p124 = pneg %p34
      %p125 = pneg %p31
      %p126 = pneg %p55
      %p127 = pneg %p52
      %p128 = pneg %p81
      %p129 = pneg %p78
      %s130 = smul.u32 32, %s13
      %p131 = scmp.lt.s32.totalorder %s130, 127
      %s132 = scalar_select %p131, %s130, 127
      %s133 = smul.addr %s132, 8
      %s134 = scalar_lea.vmem %s2, %s133
      %s135 = smul.u32 32, %s13
      %p136 = scmp.lt.s32.totalorder %s135, 127
      %s137 = scalar_select %p136, %s135, 127
      %s138 = smul.addr %s137, 8
      %s139 = scalar_lea.vmem %s0, %s138
      %s140 = smul.u32 32, %s13
      %s141 = smul.u32 32, %s13
      %p142 = scmp.lt.s32.totalorder %s141, 127
      %s143 = scalar_select %p142, %s141, 127
      %s144 = smul.addr %s143, 8
      %s145 = scalar_lea.vmem %s2, %s144
      %s146 = smul.u32 32, %s13
      %v147 = vld [vmem:[%s139] sm:$0xff]
      %v148 = vld [vmem:[%s139 + $0x8] sm:$0xff]
      %v149 = vld [vmem:[%s139 + $0x10] sm:$0xff]
      %v150 = vld [vmem:[%s139 + $0x18] sm:$0xff]
      %v151 = vld [vmem:[%s139 + $0x20] sm:$0xff]
      %v152 = vld [vmem:[%s139 + $0x28] sm:$0xff]
      %v153 = vld [vmem:[%s139 + $0x30] sm:$0xff]
      %v154 = vld [vmem:[%s139 + $0x38] sm:$0xff]
      %v155 = vld [vmem:[%s139 + $0x40] sm:$0xff]
      %v156 = vld [vmem:[%s139 + $0x48] sm:$0xff]
      %v157 = vld [vmem:[%s139 + $0x50] sm:$0xff]
      %v158 = vld [vmem:[%s139 + $0x58] sm:$0xff]
      %v159 = vld [vmem:[%s139 + $0x60] sm:$0xff]
      %v160 = vld [vmem:[%s139 + $0x68] sm:$0xff]
      %v161 = vld [vmem:[%s139 + $0x70] sm:$0xff]
      %v162 = vld [vmem:[%s139 + $0x78] sm:$0xff]
      %v163 = vld [vmem:[%s139 + $0x80] sm:$0xff]
      %v164 = vld [vmem:[%s139 + $0x88] sm:$0xff]
      %v165 = vld [vmem:[%s139 + $0x90] sm:$0xff]
      %v166 = vld [vmem:[%s139 + $0x98] sm:$0xff]
      %v167 = vld [vmem:[%s139 + $0xa0] sm:$0xff]
      %v168 = vld [vmem:[%s139 + $0xa8] sm:$0xff]
      %v169 = vld [vmem:[%s139 + $0xb0] sm:$0xff]
      %v170 = vld [vmem:[%s139 + $0xb8] sm:$0xff]
      %v171 = vld [vmem:[%s139 + $0xc0] sm:$0xff]
      %v172 = vld [vmem:[%s139 + $0xc8] sm:$0xff]
      %v173 = vld [vmem:[%s139 + $0xd0] sm:$0xff]
      %v174 = vld [vmem:[%s139 + $0xd8] sm:$0xff]
      %v175 = vld [vmem:[%s139 + $0xe0] sm:$0xff]
      %v176 = vld [vmem:[%s139 + $0xe8] sm:$0xff]
      %v177 = vld [vmem:[%s139 + $0xf0] sm:$0xff]
      %v178 = vld [vmem:[%s139 + $0xf8] sm:$0xff]
      %v179 = vadd.s32 %v147, 8
      %v180 = vadd.s32 %v148, 8
      %v181 = vadd.s32 %v149, 8
      %v182 = vadd.s32 %v150, 8
      %v183 = vadd.s32 %v151, 8
      %v184 = vadd.s32 %v152, 8
      %v185 = vadd.s32 %v153, 8
      %v186 = vadd.s32 %v154, 8
      %v187 = vadd.s32 %v155, 8
      %v188 = vadd.s32 %v156, 8
      %v189 = vadd.s32 %v157, 8
      %v190 = vadd.s32 %v158, 8
      %v191 = vadd.s32 %v159, 8
      %v192 = vadd.s32 %v160, 8
      %v193 = vadd.s32 %v161, 8
      %v194 = vadd.s32 %v162, 8
      %v195 = vadd.s32 %v163, 8
      %v196 = vadd.s32 %v164, 8
      %v197 = vadd.s32 %v165, 8
      %v198 = vadd.s32 %v166, 8
      %v199 = vadd.s32 %v167, 8
      %v200 = vadd.s32 %v168, 8
      %v201 = vadd.s32 %v169, 8
      %v202 = vadd.s32 %v170, 8
      %v203 = vadd.s32 %v171, 8
      %v204 = vadd.s32 %v172, 8
      %v205 = vadd.s32 %v173, 8
      %v206 = vadd.s32 %v174, 8
      %v207 = vadd.s32 %v175, 8
      %v208 = vadd.s32 %v176, 8
      %v209 = vadd.s32 %v177, 8
      %v210 = vadd.s32 %v178, 8
      %vm211 = vcmp.lt.s32.totalorder %v147, 10
      %v212 = vsel %vm211, %v147, 10
      %vm213 = vcmp.lt.s32.totalorder %v148, 10
      %v214 = vsel %vm213, %v148, 10
      %vm215 = vcmp.lt.s32.totalorder %v149, 10
      %v216 = vsel %vm215, %v149, 10
      %vm217 = vcmp.lt.s32.totalorder %v150, 10
      %v218 = vsel %vm217, %v150, 10
      %vm219 = vcmp.lt.s32.totalorder %v151, 10
      %v220 = vsel %vm219, %v151, 10
      %vm221 = vcmp.lt.s32.totalorder %v152, 10
      %v222 = vsel %vm221, %v152, 10
      %vm223 = vcmp.lt.s32.totalorder %v153, 10
      %v224 = vsel %vm223, %v153, 10
      %vm225 = vcmp.lt.s32.totalorder %v154, 10
      %v226 = vsel %vm225, %v154, 10
      %vm227 = vcmp.lt.s32.totalorder %v155, 10
      %v228 = vsel %vm227, %v155, 10
      %vm229 = vcmp.lt.s32.totalorder %v156, 10
      %v230 = vsel %vm229, %v156, 10
      %vm231 = vcmp.lt.s32.totalorder %v157, 10
      %v232 = vsel %vm231, %v157, 10
      %vm233 = vcmp.lt.s32.totalorder %v158, 10
      %v234 = vsel %vm233, %v158, 10
      %vm235 = vcmp.lt.s32.totalorder %v159, 10
      %v236 = vsel %vm235, %v159, 10
      %vm237 = vcmp.lt.s32.totalorder %v160, 10
      %v238 = vsel %vm237, %v160, 10
      %vm239 = vcmp.lt.s32.totalorder %v161, 10
      %v240 = vsel %vm239, %v161, 10
      %vm241 = vcmp.lt.s32.totalorder %v162, 10
      %v242 = vsel %vm241, %v162, 10
      %vm243 = vcmp.lt.s32.totalorder %v163, 10
      %v244 = vsel %vm243, %v163, 10
      %vm245 = vcmp.lt.s32.totalorder %v164, 10
      %v246 = vsel %vm245, %v164, 10
      %vm247 = vcmp.lt.s32.totalorder %v165, 10
      %v248 = vsel %vm247, %v165, 10
      %vm249 = vcmp.lt.s32.totalorder %v166, 10
      %v250 = vsel %vm249, %v166, 10
      %vm251 = vcmp.lt.s32.totalorder %v167, 10
      %v252 = vsel %vm251, %v167, 10
      %vm253 = vcmp.lt.s32.totalorder %v168, 10
      %v254 = vsel %vm253, %v168, 10
      %vm255 = vcmp.lt.s32.totalorder %v169, 10
      %v256 = vsel %vm255, %v169, 10
      %vm257 = vcmp.lt.s32.totalorder %v170, 10
      %v258 = vsel %vm257, %v170, 10
      %vm259 = vcmp.lt.s32.totalorder %v171, 10
      %v260 = vsel %vm259, %v171, 10
      %vm261 = vcmp.lt.s32.totalorder %v172, 10
      %v262 = vsel %vm261, %v172, 10
      %vm263 = vcmp.lt.s32.totalorder %v173, 10
      %v264 = vsel %vm263, %v173, 10
      %vm265 = vcmp.lt.s32.totalorder %v174, 10
      %v266 = vsel %vm265, %v174, 10
      %vm267 = vcmp.lt.s32.totalorder %v175, 10
      %v268 = vsel %vm267, %v175, 10
      %vm269 = vcmp.lt.s32.totalorder %v176, 10
      %v270 = vsel %vm269, %v176, 10
      %vm271 = vcmp.lt.s32.totalorder %v177, 10
      %v272 = vsel %vm271, %v177, 10
      %vm273 = vcmp.lt.s32.totalorder %v178, 10
      %v274 = vsel %vm273, %v178, 10
      %v275 = vadd.s32 %v212, 24
      %v276 = vadd.s32 %v214, 24
      %v277 = vadd.s32 %v216, 24
      %v278 = vadd.s32 %v218, 24
      %v279 = vadd.s32 %v220, 24
      %v280 = vadd.s32 %v222, 24
      %v281 = vadd.s32 %v224, 24
      %v282 = vadd.s32 %v226, 24
      %v283 = vadd.s32 %v228, 24
      %v284 = vadd.s32 %v230, 24
      %v285 = vadd.s32 %v232, 24
      %v286 = vadd.s32 %v234, 24
      %v287 = vadd.s32 %v236, 24
      %v288 = vadd.s32 %v238, 24
      %v289 = vadd.s32 %v240, 24
      %v290 = vadd.s32 %v242, 24
      %v291 = vadd.s32 %v244, 24
      %v292 = vadd.s32 %v246, 24
      %v293 = vadd.s32 %v248, 24
      %v294 = vadd.s32 %v250, 24
      %v295 = vadd.s32 %v252, 24
      %v296 = vadd.s32 %v254, 24
      %v297 = vadd.s32 %v256, 24
      %v298 = vadd.s32 %v258, 24
      %v299 = vadd.s32 %v260, 24
      %v300 = vadd.s32 %v262, 24
      %v301 = vadd.s32 %v264, 24
      %v302 = vadd.s32 %v266, 24
      %v303 = vadd.s32 %v268, 24
      %v304 = vadd.s32 %v270, 24
      %v305 = vadd.s32 %v272, 24
      %v306 = vadd.s32 %v274, 24
      %v307 = vlaneseq
      %v308 = vand.u32 %v307, 127
      %309 = vset.pattern.permute.xlu0 0
      %310 = vperm.xlu0 %309, %v147
      %v311 = vpop.permute.xlu0 %310
      %312 = vset.pattern.permute.xlu0 0
      %313 = vperm.xlu0 %312, %v148
      %v314 = vpop.permute.xlu0 %313
      %315 = vset.pattern.permute.xlu0 0
      %316 = vperm.xlu0 %315, %v149
      %v317 = vpop.permute.xlu0 %316
      %318 = vset.pattern.permute.xlu0 0
      %319 = vperm.xlu0 %318, %v150
      %v320 = vpop.permute.xlu0 %319
      %321 = vset.pattern.permute.xlu0 0
      %322 = vperm.xlu0 %321, %v151
      %v323 = vpop.permute.xlu0 %322
      %324 = vset.pattern.permute.xlu0 0
      %325 = vperm.xlu0 %324, %v152
      %v326 = vpop.permute.xlu0 %325
      %327 = vset.pattern.permute.xlu0 0
      %328 = vperm.xlu0 %327, %v153
      %v329 = vpop.permute.xlu0 %328
      %330 = vset.pattern.permute.xlu0 0
      %331 = vperm.xlu0 %330, %v154
      %v332 = vpop.permute.xlu0 %331
      %333 = vset.pattern.permute.xlu0 0
      %334 = vperm.xlu0 %333, %v155
      %v335 = vpop.permute.xlu0 %334
      %336 = vset.pattern.permute.xlu0 0
      %337 = vperm.xlu0 %336, %v156
      %v338 = vpop.permute.xlu0 %337
      %339 = vset.pattern.permute.xlu0 0
      %340 = vperm.xlu0 %339, %v157
      %v341 = vpop.permute.xlu0 %340
      %342 = vset.pattern.permute.xlu0 0
      %343 = vperm.xlu0 %342, %v158
      %v344 = vpop.permute.xlu0 %343
      %345 = vset.pattern.permute.xlu0 0
      %346 = vperm.xlu0 %345, %v159
      %v347 = vpop.permute.xlu0 %346
      %348 = vset.pattern.permute.xlu0 0
      %349 = vperm.xlu0 %348, %v160
      %v350 = vpop.permute.xlu0 %349
      %351 = vset.pattern.permute.xlu0 0
      %352 = vperm.xlu0 %351, %v161
      %v353 = vpop.permute.xlu0 %352
      %354 = vset.pattern.permute.xlu0 0
      %355 = vperm.xlu0 %354, %v162
      %v356 = vpop.permute.xlu0 %355
      %357 = vset.pattern.permute.xlu0 0
      %358 = vperm.xlu0 %357, %v163
      %v359 = vpop.permute.xlu0 %358
      %360 = vset.pattern.permute.xlu0 0
      %361 = vperm.xlu0 %360, %v164
      %v362 = vpop.permute.xlu0 %361
      %363 = vset.pattern.permute.xlu0 0
      %364 = vperm.xlu0 %363, %v165
      %v365 = vpop.permute.xlu0 %364
      %366 = vset.pattern.permute.xlu0 0
      %367 = vperm.xlu0 %366, %v166
      %v368 = vpop.permute.xlu0 %367
      %369 = vset.pattern.permute.xlu0 0
      %370 = vperm.xlu0 %369, %v167
      %v371 = vpop.permute.xlu0 %370
      %372 = vset.pattern.permute.xlu0 0
      %373 = vperm.xlu0 %372, %v168
      %v374 = vpop.permute.xlu0 %373
      %375 = vset.pattern.permute.xlu0 0
      %376 = vperm.xlu0 %375, %v169
      %v377 = vpop.permute.xlu0 %376
      %378 = vset.pattern.permute.xlu0 0
      %379 = vperm.xlu0 %378, %v170
      %v380 = vpop.permute.xlu0 %379
      %381 = vset.pattern.permute.xlu0 0
      %382 = vperm.xlu0 %381, %v171
      %v383 = vpop.permute.xlu0 %382
      %384 = vset.pattern.permute.xlu0 0
      %385 = vperm.xlu0 %384, %v172
      %v386 = vpop.permute.xlu0 %385
      %387 = vset.pattern.permute.xlu0 0
      %388 = vperm.xlu0 %387, %v173
      %v389 = vpop.permute.xlu0 %388
      %390 = vset.pattern.permute.xlu0 0
      %391 = vperm.xlu0 %390, %v174
      %v392 = vpop.permute.xlu0 %391
      %393 = vset.pattern.permute.xlu0 0
      %394 = vperm.xlu0 %393, %v175
      %v395 = vpop.permute.xlu0 %394
      %396 = vset.pattern.permute.xlu0 0
      %397 = vperm.xlu0 %396, %v176
      %v398 = vpop.permute.xlu0 %397
      %399 = vset.pattern.permute.xlu0 0
      %400 = vperm.xlu0 %399, %v177
      %v401 = vpop.permute.xlu0 %400
      %402 = vset.pattern.permute.xlu0 0
      %403 = vperm.xlu0 %402, %v178
      %v404 = vpop.permute.xlu0 %403
      %vm405 = vcmp.eq.s32.totalorder %v311, %v308
      %vm406 = vcmp.eq.s32.totalorder %v314, %v308
      %vm407 = vcmp.eq.s32.totalorder %v317, %v308
      %vm408 = vcmp.eq.s32.totalorder %v320, %v308
      %vm409 = vcmp.eq.s32.totalorder %v323, %v308
      %vm410 = vcmp.eq.s32.totalorder %v326, %v308
      %vm411 = vcmp.eq.s32.totalorder %v329, %v308
      %vm412 = vcmp.eq.s32.totalorder %v332, %v308
      %vm413 = vcmp.eq.s32.totalorder %v335, %v308
      %vm414 = vcmp.eq.s32.totalorder %v338, %v308
      %vm415 = vcmp.eq.s32.totalorder %v341, %v308
      %vm416 = vcmp.eq.s32.totalorder %v344, %v308
      %vm417 = vcmp.eq.s32.totalorder %v347, %v308
      %vm418 = vcmp.eq.s32.totalorder %v350, %v308
      %vm419 = vcmp.eq.s32.totalorder %v353, %v308
      %vm420 = vcmp.eq.s32.totalorder %v356, %v308
      %vm421 = vcmp.eq.s32.totalorder %v359, %v308
      %vm422 = vcmp.eq.s32.totalorder %v362, %v308
      %vm423 = vcmp.eq.s32.totalorder %v365, %v308
      %vm424 = vcmp.eq.s32.totalorder %v368, %v308
      %vm425 = vcmp.eq.s32.totalorder %v371, %v308
      %vm426 = vcmp.eq.s32.totalorder %v374, %v308
      %vm427 = vcmp.eq.s32.totalorder %v377, %v308
      %vm428 = vcmp.eq.s32.totalorder %v380, %v308
      %vm429 = vcmp.eq.s32.totalorder %v383, %v308
      %vm430 = vcmp.eq.s32.totalorder %v386, %v308
      %vm431 = vcmp.eq.s32.totalorder %v389, %v308
      %vm432 = vcmp.eq.s32.totalorder %v392, %v308
      %vm433 = vcmp.eq.s32.totalorder %v395, %v308
      %vm434 = vcmp.eq.s32.totalorder %v398, %v308
      %vm435 = vcmp.eq.s32.totalorder %v401, %v308
      %vm436 = vcmp.eq.s32.totalorder %v404, %v308
      %437 = vset.pattern.permute.xlu0 1
      %438 = vperm.xlu0 %437, %v179
      %v439 = vpop.permute.xlu0 %438
      %440 = vset.pattern.permute.xlu0 1
      %441 = vperm.xlu0 %440, %v180
      %v442 = vpop.permute.xlu0 %441
      %443 = vset.pattern.permute.xlu0 1
      %444 = vperm.xlu0 %443, %v181
      %v445 = vpop.permute.xlu0 %444
      %446 = vset.pattern.permute.xlu0 1
      %447 = vperm.xlu0 %446, %v182
      %v448 = vpop.permute.xlu0 %447
      %449 = vset.pattern.permute.xlu0 1
      %450 = vperm.xlu0 %449, %v183
      %v451 = vpop.permute.xlu0 %450
      %452 = vset.pattern.permute.xlu0 1
      %453 = vperm.xlu0 %452, %v184
      %v454 = vpop.permute.xlu0 %453
      %455 = vset.pattern.permute.xlu0 1
      %456 = vperm.xlu0 %455, %v185
      %v457 = vpop.permute.xlu0 %456
      %458 = vset.pattern.permute.xlu0 1
      %459 = vperm.xlu0 %458, %v186
      %v460 = vpop.permute.xlu0 %459
      %461 = vset.pattern.permute.xlu0 1
      %462 = vperm.xlu0 %461, %v187
      %v463 = vpop.permute.xlu0 %462
      %464 = vset.pattern.permute.xlu0 1
      %465 = vperm.xlu0 %464, %v188
      %v466 = vpop.permute.xlu0 %465
      %467 = vset.pattern.permute.xlu0 1
      %468 = vperm.xlu0 %467, %v189
      %v469 = vpop.permute.xlu0 %468
      %470 = vset.pattern.permute.xlu0 1
      %471 = vperm.xlu0 %470, %v190
      %v472 = vpop.permute.xlu0 %471
      %473 = vset.pattern.permute.xlu0 1
      %474 = vperm.xlu0 %473, %v191
      %v475 = vpop.permute.xlu0 %474
      %476 = vset.pattern.permute.xlu0 1
      %477 = vperm.xlu0 %476, %v192
      %v478 = vpop.permute.xlu0 %477
      %479 = vset.pattern.permute.xlu0 1
      %480 = vperm.xlu0 %479, %v193
      %v481 = vpop.permute.xlu0 %480
      %482 = vset.pattern.permute.xlu0 1
      %483 = vperm.xlu0 %482, %v194
      %v484 = vpop.permute.xlu0 %483
      %485 = vset.pattern.permute.xlu0 1
      %486 = vperm.xlu0 %485, %v195
      %v487 = vpop.permute.xlu0 %486
      %488 = vset.pattern.permute.xlu0 1
      %489 = vperm.xlu0 %488, %v196
      %v490 = vpop.permute.xlu0 %489
      %491 = vset.pattern.permute.xlu0 1
      %492 = vperm.xlu0 %491, %v197
      %v493 = vpop.permute.xlu0 %492
      %494 = vset.pattern.permute.xlu0 1
      %495 = vperm.xlu0 %494, %v198
      %v496 = vpop.permute.xlu0 %495
      %497 = vset.pattern.permute.xlu0 1
      %498 = vperm.xlu0 %497, %v199
      %v499 = vpop.permute.xlu0 %498
      %500 = vset.pattern.permute.xlu0 1
      %501 = vperm.xlu0 %500, %v200
      %v502 = vpop.permute.xlu0 %501
      %503 = vset.pattern.permute.xlu0 1
      %504 = vperm.xlu0 %503, %v201
      %v505 = vpop.permute.xlu0 %504
      %506 = vset.pattern.permute.xlu0 1
      %507 = vperm.xlu0 %506, %v202
      %v508 = vpop.permute.xlu0 %507
      %509 = vset.pattern.permute.xlu0 1
      %510 = vperm.xlu0 %509, %v203
      %v511 = vpop.permute.xlu0 %510
      %512 = vset.pattern.permute.xlu0 1
      %513 = vperm.xlu0 %512, %v204
      %v514 = vpop.permute.xlu0 %513
      %515 = vset.pattern.permute.xlu0 1
      %516 = vperm.xlu0 %515, %v205
      %v517 = vpop.permute.xlu0 %516
      %518 = vset.pattern.permute.xlu0 1
      %519 = vperm.xlu0 %518, %v206
      %v520 = vpop.permute.xlu0 %519
      %521 = vset.pattern.permute.xlu0 1
      %522 = vperm.xlu0 %521, %v207
      %v523 = vpop.permute.xlu0 %522
      %524 = vset.pattern.permute.xlu0 1
      %525 = vperm.xlu0 %524, %v208
      %v526 = vpop.permute.xlu0 %525
      %527 = vset.pattern.permute.xlu0 1
      %528 = vperm.xlu0 %527, %v209
      %v529 = vpop.permute.xlu0 %528
      %530 = vset.pattern.permute.xlu0 1
      %531 = vperm.xlu0 %530, %v210
      %v532 = vpop.permute.xlu0 %531
      %vm533 = vcmp.eq.s32.totalorder %v439, %v308
      %vm534 = vcmp.eq.s32.totalorder %v442, %v308
      %vm535 = vcmp.eq.s32.totalorder %v445, %v308
      %vm536 = vcmp.eq.s32.totalorder %v448, %v308
      %vm537 = vcmp.eq.s32.totalorder %v451, %v308
      %vm538 = vcmp.eq.s32.totalorder %v454, %v308
      %vm539 = vcmp.eq.s32.totalorder %v457, %v308
      %vm540 = vcmp.eq.s32.totalorder %v460, %v308
      %vm541 = vcmp.eq.s32.totalorder %v463, %v308
      %vm542 = vcmp.eq.s32.totalorder %v466, %v308
      %vm543 = vcmp.eq.s32.totalorder %v469, %v308
      %vm544 = vcmp.eq.s32.totalorder %v472, %v308
      %vm545 = vcmp.eq.s32.totalorder %v475, %v308
      %vm546 = vcmp.eq.s32.totalorder %v478, %v308
      %vm547 = vcmp.eq.s32.totalorder %v481, %v308
      %vm548 = vcmp.eq.s32.totalorder %v484, %v308
      %vm549 = vcmp.eq.s32.totalorder %v487, %v308
      %vm550 = vcmp.eq.s32.totalorder %v490, %v308
      %vm551 = vcmp.eq.s32.totalorder %v493, %v308
      %vm552 = vcmp.eq.s32.totalorder %v496, %v308
      %vm553 = vcmp.eq.s32.totalorder %v499, %v308
      %vm554 = vcmp.eq.s32.totalorder %v502, %v308
      %vm555 = vcmp.eq.s32.totalorder %v505, %v308
      %vm556 = vcmp.eq.s32.totalorder %v508, %v308
      %vm557 = vcmp.eq.s32.totalorder %v511, %v308
      %vm558 = vcmp.eq.s32.totalorder %v514, %v308
      %vm559 = vcmp.eq.s32.totalorder %v517, %v308
      %vm560 = vcmp.eq.s32.totalorder %v520, %v308
      %vm561 = vcmp.eq.s32.totalorder %v523, %v308
      %vm562 = vcmp.eq.s32.totalorder %v526, %v308
      %vm563 = vcmp.eq.s32.totalorder %v529, %v308
      %vm564 = vcmp.eq.s32.totalorder %v532, %v308
      %vm565 = vmor %vm405, %vm533
      %vm566 = vmor %vm406, %vm534
      %vm567 = vmor %vm407, %vm535
      %vm568 = vmor %vm408, %vm536
      %vm569 = vmor %vm409, %vm537
      %vm570 = vmor %vm410, %vm538
      %vm571 = vmor %vm411, %vm539
      %vm572 = vmor %vm412, %vm540
      %vm573 = vmor %vm413, %vm541
      %vm574 = vmor %vm414, %vm542
      %vm575 = vmor %vm415, %vm543
      %vm576 = vmor %vm416, %vm544
      %vm577 = vmor %vm417, %vm545
      %vm578 = vmor %vm418, %vm546
      %vm579 = vmor %vm419, %vm547
      %vm580 = vmor %vm420, %vm548
      %vm581 = vmor %vm421, %vm549
      %vm582 = vmor %vm422, %vm550
      %vm583 = vmor %vm423, %vm551
      %vm584 = vmor %vm424, %vm552
      %vm585 = vmor %vm425, %vm553
      %vm586 = vmor %vm426, %vm554
      %vm587 = vmor %vm427, %vm555
      %vm588 = vmor %vm428, %vm556
      %vm589 = vmor %vm429, %vm557
      %vm590 = vmor %vm430, %vm558
      %vm591 = vmor %vm431, %vm559
      %vm592 = vmor %vm432, %vm560
      %vm593 = vmor %vm433, %vm561
      %vm594 = vmor %vm434, %vm562
      %vm595 = vmor %vm435, %vm563
      %vm596 = vmor %vm436, %vm564
      %597 = vset.pattern.permute.xlu0 2
      %598 = vperm.xlu0 %597, %v275
      %v599 = vpop.permute.xlu0 %598
      %600 = vset.pattern.permute.xlu0 2
      %601 = vperm.xlu0 %600, %v276
      %v602 = vpop.permute.xlu0 %601
      %603 = vset.pattern.permute.xlu0 2
      %604 = vperm.xlu0 %603, %v277
      %v605 = vpop.permute.xlu0 %604
      %606 = vset.pattern.permute.xlu0 2
      %607 = vperm.xlu0 %606, %v278
      %v608 = vpop.permute.xlu0 %607
      %609 = vset.pattern.permute.xlu0 2
      %610 = vperm.xlu0 %609, %v279
      %v611 = vpop.permute.xlu0 %610
      %612 = vset.pattern.permute.xlu0 2
      %613 = vperm.xlu0 %612, %v280
      %v614 = vpop.permute.xlu0 %613
      %615 = vset.pattern.permute.xlu0 2
      %616 = vperm.xlu0 %615, %v281
      %v617 = vpop.permute.xlu0 %616
      %618 = vset.pattern.permute.xlu0 2
      %619 = vperm.xlu0 %618, %v282
      %v620 = vpop.permute.xlu0 %619
      %621 = vset.pattern.permute.xlu0 2
      %622 = vperm.xlu0 %621, %v283
      %v623 = vpop.permute.xlu0 %622
      %624 = vset.pattern.permute.xlu0 2
      %625 = vperm.xlu0 %624, %v284
      %v626 = vpop.permute.xlu0 %625
      %627 = vset.pattern.permute.xlu0 2
      %628 = vperm.xlu0 %627, %v285
      %v629 = vpop.permute.xlu0 %628
      %630 = vset.pattern.permute.xlu0 2
      %631 = vperm.xlu0 %630, %v286
      %v632 = vpop.permute.xlu0 %631
      %633 = vset.pattern.permute.xlu0 2
      %634 = vperm.xlu0 %633, %v287
      %v635 = vpop.permute.xlu0 %634
      %636 = vset.pattern.permute.xlu0 2
      %637 = vperm.xlu0 %636, %v288
      %v638 = vpop.permute.xlu0 %637
      %639 = vset.pattern.permute.xlu0 2
      %640 = vperm.xlu0 %639, %v289
      %v641 = vpop.permute.xlu0 %640
      %642 = vset.pattern.permute.xlu0 2
      %643 = vperm.xlu0 %642, %v290
      %v644 = vpop.permute.xlu0 %643
      %645 = vset.pattern.permute.xlu0 2
      %646 = vperm.xlu0 %645, %v291
      %v647 = vpop.permute.xlu0 %646
      %648 = vset.pattern.permute.xlu0 2
      %649 = vperm.xlu0 %648, %v292
      %v650 = vpop.permute.xlu0 %649
      %651 = vset.pattern.permute.xlu0 2
      %652 = vperm.xlu0 %651, %v293
      %v653 = vpop.permute.xlu0 %652
      %654 = vset.pattern.permute.xlu0 2
      %655 = vperm.xlu0 %654, %v294
      %v656 = vpop.permute.xlu0 %655
      %657 = vset.pattern.permute.xlu0 2
      %658 = vperm.xlu0 %657, %v295
      %v659 = vpop.permute.xlu0 %658
      %660 = vset.pattern.permute.xlu0 2
      %661 = vperm.xlu0 %660, %v296
      %v662 = vpop.permute.xlu0 %661
      %663 = vset.pattern.permute.xlu0 2
      %664 = vperm.xlu0 %663, %v297
      %v665 = vpop.permute.xlu0 %664
      %666 = vset.pattern.permute.xlu0 2
      %667 = vperm.xlu0 %666, %v298
      %v668 = vpop.permute.xlu0 %667
      %669 = vset.pattern.permute.xlu0 2
      %670 = vperm.xlu0 %669, %v299
      %v671 = vpop.permute.xlu0 %670
      %672 = vset.pattern.permute.xlu0 2
      %673 = vperm.xlu0 %672, %v300
      %v674 = vpop.permute.xlu0 %673
      %675 = vset.pattern.permute.xlu0 2
      %676 = vperm.xlu0 %675, %v301
      %v677 = vpop.permute.xlu0 %676
      %678 = vset.pattern.permute.xlu0 2
      %679 = vperm.xlu0 %678, %v302
      %v680 = vpop.permute.xlu0 %679
      %681 = vset.pattern.permute.xlu0 2
      %682 = vperm.xlu0 %681, %v303
      %v683 = vpop.permute.xlu0 %682
      %684 = vset.pattern.permute.xlu0 2
      %685 = vperm.xlu0 %684, %v304
      %v686 = vpop.permute.xlu0 %685
      %687 = vset.pattern.permute.xlu0 2
      %688 = vperm.xlu0 %687, %v305
      %v689 = vpop.permute.xlu0 %688
      %690 = vset.pattern.permute.xlu0 2
      %691 = vperm.xlu0 %690, %v306
      %v692 = vpop.permute.xlu0 %691
      %vm693 = vcmp.eq.s32.totalorder %v599, %v308
      %vm694 = vcmp.eq.s32.totalorder %v602, %v308
      %vm695 = vcmp.eq.s32.totalorder %v605, %v308
      %vm696 = vcmp.eq.s32.totalorder %v608, %v308
      %vm697 = vcmp.eq.s32.totalorder %v611, %v308
      %vm698 = vcmp.eq.s32.totalorder %v614, %v308
      %vm699 = vcmp.eq.s32.totalorder %v617, %v308
      %vm700 = vcmp.eq.s32.totalorder %v620, %v308
      %vm701 = vcmp.eq.s32.totalorder %v623, %v308
      %vm702 = vcmp.eq.s32.totalorder %v626, %v308
      %vm703 = vcmp.eq.s32.totalorder %v629, %v308
      %vm704 = vcmp.eq.s32.totalorder %v632, %v308
      %vm705 = vcmp.eq.s32.totalorder %v635, %v308
      %vm706 = vcmp.eq.s32.totalorder %v638, %v308
      %vm707 = vcmp.eq.s32.totalorder %v641, %v308
      %vm708 = vcmp.eq.s32.totalorder %v644, %v308
      %vm709 = vcmp.eq.s32.totalorder %v647, %v308
      %vm710 = vcmp.eq.s32.totalorder %v650, %v308
      %vm711 = vcmp.eq.s32.totalorder %v653, %v308
      %vm712 = vcmp.eq.s32.totalorder %v656, %v308
      %vm713 = vcmp.eq.s32.totalorder %v659, %v308
      %vm714 = vcmp.eq.s32.totalorder %v662, %v308
      %vm715 = vcmp.eq.s32.totalorder %v665, %v308
      %vm716 = vcmp.eq.s32.totalorder %v668, %v308
      %vm717 = vcmp.eq.s32.totalorder %v671, %v308
      %vm718 = vcmp.eq.s32.totalorder %v674, %v308
      %vm719 = vcmp.eq.s32.totalorder %v677, %v308
      %vm720 = vcmp.eq.s32.totalorder %v680, %v308
      %vm721 = vcmp.eq.s32.totalorder %v683, %v308
      %vm722 = vcmp.eq.s32.totalorder %v686, %v308
      %vm723 = vcmp.eq.s32.totalorder %v689, %v308
      %vm724 = vcmp.eq.s32.totalorder %v692, %v308
      %vm725 = vmor %vm565, %vm693
      %vm726 = vmor %vm566, %vm694
      %vm727 = vmor %vm567, %vm695
      %vm728 = vmor %vm568, %vm696
      %vm729 = vmor %vm569, %vm697
      %vm730 = vmor %vm570, %vm698
      %vm731 = vmor %vm571, %vm699
      %vm732 = vmor %vm572, %vm700
      %vm733 = vmor %vm573, %vm701
      %vm734 = vmor %vm574, %vm702
      %vm735 = vmor %vm575, %vm703
      %vm736 = vmor %vm576, %vm704
      %vm737 = vmor %vm577, %vm705
      %vm738 = vmor %vm578, %vm706
      %vm739 = vmor %vm579, %vm707
      %vm740 = vmor %vm580, %vm708
      %vm741 = vmor %vm581, %vm709
      %vm742 = vmor %vm582, %vm710
      %vm743 = vmor %vm583, %vm711
      %vm744 = vmor %vm584, %vm712
      %vm745 = vmor %vm585, %vm713
      %vm746 = vmor %vm586, %vm714
      %vm747 = vmor %vm587, %vm715
      %vm748 = vmor %vm588, %vm716
      %vm749 = vmor %vm589, %vm717
      %vm750 = vmor %vm590, %vm718
      %vm751 = vmor %vm591, %vm719
      %vm752 = vmor %vm592, %vm720
      %vm753 = vmor %vm593, %vm721
      %vm754 = vmor %vm594, %vm722
      %vm755 = vmor %vm595, %vm723
      %vm756 = vmor %vm596, %vm724
      %v757 = vsel %vm725, 1, 0
      %v758 = vsel %vm726, 1, 0
      %v759 = vsel %vm727, 1, 0
      %v760 = vsel %vm728, 1, 0
      %v761 = vsel %vm729, 1, 0
      %v762 = vsel %vm730, 1, 0
      %v763 = vsel %vm731, 1, 0
      %v764 = vsel %vm732, 1, 0
      %v765 = vsel %vm733, 1, 0
      %v766 = vsel %vm734, 1, 0
      %v767 = vsel %vm735, 1, 0
      %v768 = vsel %vm736, 1, 0
      %v769 = vsel %vm737, 1, 0
      %v770 = vsel %vm738, 1, 0
      %v771 = vsel %vm739, 1, 0
      %v772 = vsel %vm740, 1, 0
      %v773 = vsel %vm741, 1, 0
      %v774 = vsel %vm742, 1, 0
      %v775 = vsel %vm743, 1, 0
      %v776 = vsel %vm744, 1, 0
      %v777 = vsel %vm745, 1, 0
      %v778 = vsel %vm746, 1, 0
      %v779 = vsel %vm747, 1, 0
      %v780 = vsel %vm748, 1, 0
      %v781 = vsel %vm749, 1, 0
      %v782 = vsel %vm750, 1, 0
      %v783 = vsel %vm751, 1, 0
      %v784 = vsel %vm752, 1, 0
      %v785 = vsel %vm753, 1, 0
      %v786 = vsel %vm754, 1, 0
      %v787 = vsel %vm755, 1, 0
      %v788 = vsel %vm756, 1, 0
      %v789 = vcvt.s32.f32 %v757
      %v790 = vcvt.s32.f32 %v758
      %v791 = vcvt.s32.f32 %v759
      %v792 = vcvt.s32.f32 %v760
      %v793 = vcvt.s32.f32 %v761
      %v794 = vcvt.s32.f32 %v762
      %v795 = vcvt.s32.f32 %v763
      %v796 = vcvt.s32.f32 %v764
      %v797 = vcvt.s32.f32 %v765
      %v798 = vcvt.s32.f32 %v766
      %v799 = vcvt.s32.f32 %v767
      %v800 = vcvt.s32.f32 %v768
      %v801 = vcvt.s32.f32 %v769
      %v802 = vcvt.s32.f32 %v770
      %v803 = vcvt.s32.f32 %v771
      %v804 = vcvt.s32.f32 %v772
      %v805 = vcvt.s32.f32 %v773
      %v806 = vcvt.s32.f32 %v774
      %v807 = vcvt.s32.f32 %v775
      %v808 = vcvt.s32.f32 %v776
      %v809 = vcvt.s32.f32 %v777
      %v810 = vcvt.s32.f32 %v778
      %v811 = vcvt.s32.f32 %v779
      %v812 = vcvt.s32.f32 %v780
      %v813 = vcvt.s32.f32 %v781
      %v814 = vcvt.s32.f32 %v782
      %v815 = vcvt.s32.f32 %v783
      %v816 = vcvt.s32.f32 %v784
      %v817 = vcvt.s32.f32 %v785
      %v818 = vcvt.s32.f32 %v786
      %v819 = vcvt.s32.f32 %v787
      %v820 = vcvt.s32.f32 %v788
      %v821 = vld [vmem:[%s1] sm:$0xff]
      %v822 = vld [vmem:[%s1 + $0x8] sm:$0xff]
      %v823 = vld [vmem:[%s1 + $0x10] sm:$0xff]
      %v824 = vld [vmem:[%s1 + $0x18] sm:$0xff]
      %v825 = vld [vmem:[%s1 + $0x20] sm:$0xff]
      %v826 = vld [vmem:[%s1 + $0x28] sm:$0xff]
      %v827 = vld [vmem:[%s1 + $0x30] sm:$0xff]
      %v828 = vld [vmem:[%s1 + $0x38] sm:$0xff]
      %v829 = vld [vmem:[%s1 + $0x40] sm:$0xff]
      %v830 = vld [vmem:[%s1 + $0x48] sm:$0xff]
      %v831 = vld [vmem:[%s1 + $0x50] sm:$0xff]
      %v832 = vld [vmem:[%s1 + $0x58] sm:$0xff]
      %v833 = vld [vmem:[%s1 + $0x60] sm:$0xff]
      %v834 = vld [vmem:[%s1 + $0x68] sm:$0xff]
      %v835 = vld [vmem:[%s1 + $0x70] sm:$0xff]
      %v836 = vld [vmem:[%s1 + $0x78] sm:$0xff]
      %837 = vmatpush.msra.mxu0 %v836
      %838 = vmatpush.msra.mxu0 %v835
      %839 = vmatpush.msra.mxu0 %v834
      %840 = vmatpush.msra.mxu0 %v833
      %841 = vmatpush.msra.mxu0 %v832
      %842 = vmatpush.msra.mxu0 %v831
      %843 = vmatpush.msra.mxu0 %v830
      %844 = vmatpush.msra.mxu0 %v829
      %845 = vmatpush.msra.mxu0 %v828
      %846 = vmatpush.msra.mxu0 %v827
      %847 = vmatpush.msra.mxu0 %v826
      %848 = vmatpush.msra.mxu0 %v825
      %849 = vmatpush.msra.mxu0 %v824
      %850 = vmatpush.msra.mxu0 %v823
      %851 = vmatpush.msra.mxu0 %v822
      %852 = vmatpush.msra.mxu0 %v821
      %853 = vmatmul.f32.gmra.mxu0 %v789
      %v854 = vpop.f32.mrf.mxu0
      %v855 = vadd.f32 0.0, %v854
      %856 = vmatmul.f32.gmra.mxu0 %v790
      %v857 = vpop.f32.mrf.mxu0
      %v858 = vadd.f32 0.0, %v857
      %859 = vmatmul.f32.gmra.mxu0 %v791
      %v860 = vpop.f32.mrf.mxu0
      %v861 = vadd.f32 0.0, %v860
      %862 = vmatmul.f32.gmra.mxu0 %v792
      %v863 = vpop.f32.mrf.mxu0
      %v864 = vadd.f32 0.0, %v863
      %865 = vmatmul.f32.gmra.mxu0 %v793
      %v866 = vpop.f32.mrf.mxu0
      %v867 = vadd.f32 0.0, %v866
      %868 = vmatmul.f32.gmra.mxu0 %v794
      %v869 = vpop.f32.mrf.mxu0
      %v870 = vadd.f32 0.0, %v869
      %871 = vmatmul.f32.gmra.mxu0 %v795
      %v872 = vpop.f32.mrf.mxu0
      %v873 = vadd.f32 0.0, %v872
      %874 = vmatmul.f32.gmra.mxu0 %v796
      %v875 = vpop.f32.mrf.mxu0
      %v876 = vadd.f32 0.0, %v875
      %877 = vmatmul.f32.gmra.mxu0 %v797
      %v878 = vpop.f32.mrf.mxu0
      %v879 = vadd.f32 0.0, %v878
      %880 = vmatmul.f32.gmra.mxu0 %v798
      %v881 = vpop.f32.mrf.mxu0
      %v882 = vadd.f32 0.0, %v881
      %883 = vmatmul.f32.gmra.mxu0 %v799
      %v884 = vpop.f32.mrf.mxu0
      %v885 = vadd.f32 0.0, %v884
      %886 = vmatmul.f32.gmra.mxu0 %v800
      %v887 = vpop.f32.mrf.mxu0
      %v888 = vadd.f32 0.0, %v887
      %889 = vmatmul.f32.gmra.mxu0 %v801
      %v890 = vpop.f32.mrf.mxu0
      %v891 = vadd.f32 0.0, %v890
      %892 = vmatmul.f32.gmra.mxu0 %v802
      %v893 = vpop.f32.mrf.mxu0
      %v894 = vadd.f32 0.0, %v893
      %895 = vmatmul.f32.gmra.mxu0 %v803
      %v896 = vpop.f32.mrf.mxu0
      %v897 = vadd.f32 0.0, %v896
      %898 = vmatmul.f32.gmra.mxu0 %v804
      %v899 = vpop.f32.mrf.mxu0
      %v900 = vadd.f32 0.0, %v899
      %901 = vmatmul.f32.gmra.mxu0 %v805
      %v902 = vpop.f32.mrf.mxu0
      %v903 = vadd.f32 0.0, %v902
      %904 = vmatmul.f32.gmra.mxu0 %v806
      %v905 = vpop.f32.mrf.mxu0
      %v906 = vadd.f32 0.0, %v905
      %907 = vmatmul.f32.gmra.mxu0 %v807
      %v908 = vpop.f32.mrf.mxu0
      %v909 = vadd.f32 0.0, %v908
      %910 = vmatmul.f32.gmra.mxu0 %v808
      %v911 = vpop.f32.mrf.mxu0
      %v912 = vadd.f32 0.0, %v911
      %913 = vmatmul.f32.gmra.mxu0 %v809
      %v914 = vpop.f32.mrf.mxu0
      %v915 = vadd.f32 0.0, %v914
      %916 = vmatmul.f32.gmra.mxu0 %v810
      %v917 = vpop.f32.mrf.mxu0
      %v918 = vadd.f32 0.0, %v917
      %919 = vmatmul.f32.gmra.mxu0 %v811
      %v920 = vpop.f32.mrf.mxu0
      %v921 = vadd.f32 0.0, %v920
      %922 = vmatmul.f32.gmra.mxu0 %v812
      %v923 = vpop.f32.mrf.mxu0
      %v924 = vadd.f32 0.0, %v923
      %925 = vmatmul.f32.gmra.mxu0 %v813
      %v926 = vpop.f32.mrf.mxu0
      %v927 = vadd.f32 0.0, %v926
      %928 = vmatmul.f32.gmra.mxu0 %v814
      %v929 = vpop.f32.mrf.mxu0
      %v930 = vadd.f32 0.0, %v929
      %931 = vmatmul.f32.gmra.mxu0 %v815
      %v932 = vpop.f32.mrf.mxu0
      %v933 = vadd.f32 0.0, %v932
      %934 = vmatmul.f32.gmra.mxu0 %v816
      %v935 = vpop.f32.mrf.mxu0
      %v936 = vadd.f32 0.0, %v935
      %937 = vmatmul.f32.gmra.mxu0 %v817
      %v938 = vpop.f32.mrf.mxu0
      %v939 = vadd.f32 0.0, %v938
      %940 = vmatmul.f32.gmra.mxu0 %v818
      %v941 = vpop.f32.mrf.mxu0
      %v942 = vadd.f32 0.0, %v941
      %943 = vmatmul.f32.gmra.mxu0 %v819
      %v944 = vpop.f32.mrf.mxu0
      %v945 = vadd.f32 0.0, %v944
      %946 = vmatmul.f32.gmra.mxu0 %v820
      %v947 = vpop.f32.mrf.mxu0
      %v948 = vadd.f32 0.0, %v947
      %949 = vdwg.mxu0
      %vm950 = vcmask 261120
      %951 = vst.msk [vmem:[%s145] sm:$0xff] %vm950, %v855
      %952 = vst.msk [vmem:[%s145 + $0x8] sm:$0xff] %vm950, %v858
      %953 = vst.msk [vmem:[%s145 + $0x10] sm:$0xff] %vm950, %v861
      %954 = vst.msk [vmem:[%s145 + $0x18] sm:$0xff] %vm950, %v864
      %955 = vst.msk [vmem:[%s145 + $0x20] sm:$0xff] %vm950, %v867
      %956 = vst.msk [vmem:[%s145 + $0x28] sm:$0xff] %vm950, %v870
      %957 = vst.msk [vmem:[%s145 + $0x30] sm:$0xff] %vm950, %v873
      %958 = vst.msk [vmem:[%s145 + $0x38] sm:$0xff] %vm950, %v876
      %959 = vst.msk [vmem:[%s145 + $0x40] sm:$0xff] %vm950, %v879
      %960 = vst.msk [vmem:[%s145 + $0x48] sm:$0xff] %vm950, %v882
      %961 = vst.msk [vmem:[%s145 + $0x50] sm:$0xff] %vm950, %v885
      %962 = vst.msk [vmem:[%s145 + $0x58] sm:$0xff] %vm950, %v888
      %963 = vst.msk [vmem:[%s145 + $0x60] sm:$0xff] %vm950, %v891
      %964 = vst.msk [vmem:[%s145 + $0x68] sm:$0xff] %vm950, %v894
      %965 = vst.msk [vmem:[%s145 + $0x70] sm:$0xff] %vm950, %v897
      %966 = vst.msk [vmem:[%s145 + $0x78] sm:$0xff] %vm950, %v900
      %967 = vst.msk [vmem:[%s145 + $0x80] sm:$0xff] %vm950, %v903
      %968 = vst.msk [vmem:[%s145 + $0x88] sm:$0xff] %vm950, %v906
      %969 = vst.msk [vmem:[%s145 + $0x90] sm:$0xff] %vm950, %v909
      %970 = vst.msk [vmem:[%s145 + $0x98] sm:$0xff] %vm950, %v912
      %971 = vst.msk [vmem:[%s145 + $0xa0] sm:$0xff] %vm950, %v915
      %972 = vst.msk [vmem:[%s145 + $0xa8] sm:$0xff] %vm950, %v918
      %973 = vst.msk [vmem:[%s145 + $0xb0] sm:$0xff] %vm950, %v921
      %974 = vst.msk [vmem:[%s145 + $0xb8] sm:$0xff] %vm950, %v924
      %975 = vst.msk [vmem:[%s145 + $0xc0] sm:$0xff] %vm950, %v927
      %976 = vst.msk [vmem:[%s145 + $0xc8] sm:$0xff] %vm950, %v930
      %977 = vst.msk [vmem:[%s145 + $0xd0] sm:$0xff] %vm950, %v933
      %978 = vst.msk [vmem:[%s145 + $0xd8] sm:$0xff] %vm950, %v936
      %979 = vst.msk [vmem:[%s145 + $0xe0] sm:$0xff] %vm950, %v939
      %980 = vst.msk [vmem:[%s145 + $0xe8] sm:$0xff] %vm950, %v942
      %981 = vst.msk [vmem:[%s145 + $0xf0] sm:$0xff] %vm950, %v945
      %982 = vst.msk [vmem:[%s145 + $0xf8] sm:$0xff] %vm950, %v948
      %s983 = smul.u32 32, %s13
      %p984 = scmp.lt.s32.totalorder %s983, 127
      %s985 = scalar_select %p984, %s983, 127
      %s986 = smul.addr %s985, 8
      %s987 = scalar_lea.vmem %s2, %s986
      // Predicated region
      $region29: #{tpu_custom_call.1} parent=27 // pred_check
        %p988 = pneg %p78
      $region30: #{tpu_custom_call.1} parent=27 // pred_check_branch
        %990 = sbr.rel (%p988) target = $region32
      $region31: #{tpu_custom_call.1} parent=27 // pred_region
        %s991 = smul.u32 32, %s13
      $region32: #{tpu_custom_call.1} parent=27 // pred_fallthru
        _
    $region28: #{tpu_custom_call.1} parent=5 // pred_fallthru
      _
    %p992 = scmp.le.s32.totalorder 2, %s8
    // Predicated region
    $region33: #{tpu_custom_call.1} parent=5 // pred_check
      %p993 = pneg %p992
    $region34: #{tpu_custom_call.1} parent=5 // pred_check_branch
      %995 = sbr.rel (%p993) target = $region36
    $region35: #{tpu_custom_call.1} parent=5 // pred_region
      %s996 = ssub.s32 %s8, 2
      // Predicated region
      $region37: #{tpu_custom_call.1} parent=35 // pred_check
        %p997 = pneg %p84
      $region38: #{tpu_custom_call.1} parent=35 // pred_check_branch
        %999 = sbr.rel (%p997) target = $region40
      $region39: #{tpu_custom_call.1} parent=35 // pred_region
        %s1000 = smul.u32 32, %s14
        %p1001 = scmp.lt.s32.totalorder %s1000, 127
        %s1002 = scalar_select %p1001, %s1000, 127
        %s1003 = smul.addr %s1002, 8
        %s1004 = scalar_lea.vmem %s2, %s1003
      $region40: #{tpu_custom_call.1} parent=35 // pred_fallthru
        _
    $region36: #{tpu_custom_call.1} parent=5 // pred_fallthru
      _
  $region6: #{tpu_custom_call.1} parent=0 // loop_footer
    %s12 = sadd.s32 1, %s8
  $region7: #{tpu_custom_call.1} parent=0 // loop_footer_branch
    %7 = sbr.rel target = $region3
  $region8: #{tpu_custom_call.1} parent=0 // loop_exit
    _

</llo_original>
